<compile_context>
chip_gen: v7x
topology: tpu7x:2x2x1
jax: 0.10.0
libtpu: 0.0.40
codegen_flags: <defaults>
</compile_context>

<pallas_src>
import jax
import jax.numpy as jnp
from jax.experimental import pallas as pl
from jax.experimental.pallas import tpu as pltpu


def _round_up(n, m):
    return ((n + m - 1) // m) * m


# ----------------------------------------------------------------------------------
# Kernel: transposed, lane-dense 2-layer MLP.
#   x_t   : (in_dim,     tb)      tb is a multiple of 128 (lane-dense)
#   h_t   : (hidden,     tb)
#   out_t : (num_params, tb)
# Weights: W1 (hidden, in_dim), W2 (num_params, hidden)  -- nn.Linear native layout.
# Biases : column vectors (hidden, 1) / (num_params, 1), broadcast over lanes, f32.
# ----------------------------------------------------------------------------------
def _mlp_t_kernel(xt_ref, w1_ref, b1_ref, w2_ref, b2_ref, ot_ref):
    # h_t = relu(W1 @ x_t + b1)   -- f32 accumulation on the MXU
    h = jnp.dot(w1_ref[...], xt_ref[...], preferred_element_type=jnp.float32)
    h = jnp.maximum(h + b1_ref[...], 0.0)
    # out_t = W2 @ h_t + b2
    out = jnp.dot(w2_ref[...], h.astype(w2_ref.dtype),
                  preferred_element_type=jnp.float32) + b2_ref[...]
    ot_ref[...] = out.astype(ot_ref.dtype)


def matrix_parameter_mlp_batched(xs, w1, b1, w2, b2, num_rows, num_cols,
                                 *, use_bf16=False, max_tile_b=4096):
    """Batched / timestep-fused MatrixParameter forward (the Pallas path).

    xs: (B, in_dim).  w1: (hidden, in_dim), b1: (hidden,)  -- nn.Linear layout.
    w2: (num_params, hidden), b2: (num_params,).  Returns (B, num_rows, num_cols) f32.

    use_bf16=True streams x / W1 / W2 as bfloat16 (f32 MXU accumulation kept);
    numerics differ from the f32 reference at ~1e-2 relative level.
    """
    B, in_dim = xs.shape
    hidden = w1.shape[0]
    num_params = w2.shape[0]
    assert num_params == num_rows * num_cols
    assert w1.shape == (hidden, in_dim)
    assert b1.shape[-1] == hidden
    assert w2.shape == (num_params, hidden)
    assert b2.shape[-1] == num_params

    # Lane-dense layout: batch is the last (lane) axis -> pad to a multiple of 128.
    b128 = _round_up(max(B, 1), 128)
    xs_t = xs.T                                    # (in_dim, B): cheap layout plumbing
    if b128 != B:
        xs_t = jnp.pad(xs_t, ((0, 0), (0, b128 - B)))

    op_dtype = jnp.bfloat16 if use_bf16 else jnp.float32
    xs_t = xs_t.astype(op_dtype)
    w1_c = w1.astype(op_dtype)
    w2_c = w2.astype(op_dtype)
    b1_c = b1.reshape(hidden, 1).astype(jnp.float32)       # bias added in f32
    b2_c = b2.reshape(num_params, 1).astype(jnp.float32)

    if b128 <= max_tile_b:
        # Gridless: the whole padded batch (plus tiny weights) is pinned in VMEM.
        # No pipeline prologue, no per-step overhead.
        out_t = pl.pallas_call(
            _mlp_t_kernel,
            out_shape=jax.ShapeDtypeStruct((num_params, b128), jnp.float32),
            in_specs=[pl.BlockSpec(memory_space=pltpu.VMEM)] * 5,
            out_specs=pl.BlockSpec(memory_space=pltpu.VMEM),
        )(xs_t, w1_c, b1_c, w2_c, b2_c)
        out_t = out_t[:, :B]
    else:
        # Large-batch path: big lane-dense tiles amortize the ~0.35us/step pipeline
        # cost; weights/biases use a constant index_map so they are DMA'd once and
        # stay resident in VMEM; even grid length so v7x's two TCs both get work.
        n_tiles = pl.cdiv(b128, max_tile_b)
        if n_tiles % 2:
            n_tiles += 1                                    # megacore-friendly (v7x)
        tb = _round_up(pl.cdiv(b128, n_tiles), 128)         # minimal slack (<128/tile)
        b_pad = n_tiles * tb
        if b_pad != b128:
            xs_t = jnp.pad(xs_t, ((0, 0), (0, b_pad - b128)))
        out_t = pl.pallas_call(
            _mlp_t_kernel,
            out_shape=jax.ShapeDtypeStruct((num_params, b_pad), jnp.float32),
            grid=(n_tiles,),
            in_specs=[
                pl.BlockSpec((in_dim, tb), lambda i: (0, i)),           # x: streamed
                pl.BlockSpec((hidden, in_dim), lambda i: (0, 0)),       # W1: resident
                pl.BlockSpec((hidden, 1), lambda i: (0, 0)),            # b1: resident
                pl.BlockSpec((num_params, hidden), lambda i: (0, 0)),   # W2: resident
                pl.BlockSpec((num_params, 1), lambda i: (0, 0)),        # b2: resident
            ],
            out_specs=pl.BlockSpec((num_params, tb), lambda i: (0, i)),
            compiler_params=pltpu.CompilerParams(
                dimension_semantics=("parallel",)),
        )(xs_t, w1_c, b1_c, w2_c, b2_c)
        out_t = out_t[:, :B]

    # (num_params, B) -> (B, R, C); transpose of a tiny slab, plain XLA.
    return out_t.T.reshape(B, num_rows, num_cols)


def matrix_parameter_mlp(x, w1, b1, w2, b2, num_rows, num_cols):
    """Unbatched MatrixParameter forward (exact module semantics).

    Per the performance review: a 1x8 @ 8x32 @ 32x16 MLP is pure custom-call launch
    overhead as a standalone Pallas kernel on every TPU generation, so this path is
    plain jnp and fuses into the surrounding ODE-step computation.  Use
    matrix_parameter_mlp_batched when many timesteps can be evaluated at once.
    """
    if x.ndim == 0:
        # mirrors the 0-dim unsqueeze in PyTorch (only valid when in_dim == 1,
        # exactly as in the original module).
        x = x[None]
    h = jnp.maximum(x @ w1.T + b1, 0.0)
    out = h @ w2.T + b2
    return out.reshape(num_rows, num_cols)


def matrix_parameter_constant(explicit_p, num_rows, num_cols):
    """Constant MatrixParameter forward: pure reshape of the (R*C, 1) parameter."""
    # TODO(synk): pure data-movement glue; no compute, so no Pallas kernel.
    return explicit_p.reshape(num_rows, num_cols)


if __name__ == "__main__":
    key = jax.random.PRNGKey(0)

    # --- shapes implied by the module (small) ---
    num_rows, num_cols = 4, 4
    num_params = num_rows * num_cols
    in_dim, hidden_dim = 8, 32
    batch = 256          # moderate batch -> gridless VMEM-resident path
    batch_big = 520      # forces the tiled path (max_tile_b=256 below)

    k_p, k_x, k_xb, k_xc, k_w1, k_b1, k_w2, k_b2 = jax.random.split(key, 8)

    # constant_parameter=True path: explicit_p ~ U[0,1), shape (R*C, 1)
    explicit_p = jax.random.uniform(k_p, (num_params, 1), dtype=jnp.float32)
    m_const = matrix_parameter_constant(explicit_p, num_rows, num_cols)

    # constant_parameter=False path: parameters in native nn.Linear layout
    # (weight: (out, in), bias: (out,)), stored once at init in f32.
    bound1 = 1.0 / float(jnp.sqrt(in_dim))
    bound2 = 1.0 / float(jnp.sqrt(hidden_dim))
    w1 = jax.random.uniform(k_w1, (hidden_dim, in_dim), minval=-bound1, maxval=bound1,
                            dtype=jnp.float32)
    b1 = jax.random.uniform(k_b1, (hidden_dim,), minval=-bound1, maxval=bound1,
                            dtype=jnp.float32)
    w2 = jax.random.uniform(k_w2, (num_params, hidden_dim), minval=-bound2, maxval=bound2,
                            dtype=jnp.float32)
    b2 = jax.random.uniform(k_b2, (num_params,), minval=-bound2, maxval=bound2,
                            dtype=jnp.float32)

    x = jax.random.uniform(k_x, (in_dim,), dtype=jnp.float32)
    xs = jax.random.uniform(k_xb, (batch, in_dim), dtype=jnp.float32)
    xs_big = jax.random.uniform(k_xc, (batch_big, in_dim), dtype=jnp.float32)

    # Unbatched forward (module semantics; plain jnp per review)
    m_mlp = matrix_parameter_mlp(x, w1, b1, w2, b2, num_rows, num_cols)
    # Batched / fused Pallas forward: gridless path
    m_b = matrix_parameter_mlp_batched(xs, w1, b1, w2, b2, num_rows, num_cols)
    # Batched Pallas forward: tiled path (small max_tile_b to exercise the grid)
    m_b_tiled = matrix_parameter_mlp_batched(xs_big, w1, b1, w2, b2, num_rows, num_cols,
                                             max_tile_b=256)
    # Batched Pallas forward: bf16 operand streaming (flag-gated numerics change)
    m_b_bf16 = matrix_parameter_mlp_batched(xs, w1, b1, w2, b2, num_rows, num_cols,
                                            use_bf16=True)

    # pure-JAX reference
    def ref_fn(inp):
        return jnp.maximum(inp @ w1.T + b1, 0.0) @ w2.T + b2

    ref_single = ref_fn(x[None, :]).reshape(num_rows, num_cols)
    ref_batch = ref_fn(xs).reshape(batch, num_rows, num_cols)
    ref_big = ref_fn(xs_big).reshape(batch_big, num_rows, num_cols)

    for arr in (m_const, m_mlp, m_b, m_b_tiled, m_b_bf16):
        jax.block_until_ready(arr)

    assert m_const.shape == (num_rows, num_cols)
    assert m_mlp.shape == (num_rows, num_cols)
    assert m_b.shape == (batch, num_rows, num_cols)
    assert m_b_tiled.shape == (batch_big, num_rows, num_cols)
    assert jnp.allclose(m_mlp, ref_single, atol=2e-5, rtol=1e-5)
    assert jnp.allclose(m_b, ref_batch, atol=2e-5, rtol=1e-5)
    assert jnp.allclose(m_b_tiled, ref_big, atol=2e-5, rtol=1e-5)
    assert jnp.allclose(m_b_bf16, ref_batch, atol=5e-2, rtol=5e-2)

    print("KERNEL_OK")
</pallas_src>

<mosaic_0001>
module attributes {stable_mosaic.version = 11 : i64} {
  func.func @_mlp_t_kernel(%arg0: memref<8x256xf32, #tpu.memory_space<vmem>>, %arg1: memref<32x8xf32, #tpu.memory_space<vmem>>, %arg2: memref<32x1xf32, #tpu.memory_space<vmem>>, %arg3: memref<16x32xf32, #tpu.memory_space<vmem>>, %arg4: memref<16x1xf32, #tpu.memory_space<vmem>>, %arg5: memref<16x256xf32, #tpu.memory_space<vmem>>) attributes {dimension_semantics = [], scalar_prefetch = 0 : i64, scratch_operands = 0 : i64, tpu.core_type = #tpu.core_type<tc>} {
    %c0 = arith.constant 0 : index
    %c0_0 = arith.constant 0 : index
    %0 = vector.load %arg1[%c0, %c0_0] : memref<32x8xf32, #tpu.memory_space<vmem>>, vector<32x8xf32>
    %c0_1 = arith.constant 0 : index
    %c0_2 = arith.constant 0 : index
    %1 = vector.load %arg0[%c0_1, %c0_2] : memref<8x256xf32, #tpu.memory_space<vmem>>, vector<8x256xf32>
    %cst = arith.constant dense<0.000000e+00> : vector<32x256xf32>
    %2 = tpu.matmul %0, %1, %cst {dimension_numbers = #tpu.dot_dimension_numbers<[1], [0], [0], [1], [0, 0, 1, 1], [], []>} : vector<32x8xf32>, vector<8x256xf32>, vector<32x256xf32> -> vector<32x256xf32>
    %c0_3 = arith.constant 0 : index
    %c0_4 = arith.constant 0 : index
    %3 = vector.load %arg2[%c0_3, %c0_4] : memref<32x1xf32, #tpu.memory_space<vmem>>, vector<32x1xf32>
    %4 = vector.broadcast %3 : vector<32x1xf32> to vector<32x256xf32>
    %5 = arith.addf %2, %4 : vector<32x256xf32>
    %cst_5 = arith.constant 0.000000e+00 : f32
    %6 = vector.broadcast %cst_5 : f32 to vector<32x256xf32>
    %7 = arith.maximumf %5, %6 : vector<32x256xf32>
    %c0_6 = arith.constant 0 : index
    %c0_7 = arith.constant 0 : index
    %8 = vector.load %arg3[%c0_6, %c0_7] : memref<16x32xf32, #tpu.memory_space<vmem>>, vector<16x32xf32>
    %cst_8 = arith.constant dense<0.000000e+00> : vector<16x256xf32>
    %9 = tpu.matmul %8, %7, %cst_8 {dimension_numbers = #tpu.dot_dimension_numbers<[1], [0], [0], [1], [0, 0, 1, 1], [], []>} : vector<16x32xf32>, vector<32x256xf32>, vector<16x256xf32> -> vector<16x256xf32>
    %c0_9 = arith.constant 0 : index
    %c0_10 = arith.constant 0 : index
    %10 = vector.load %arg4[%c0_9, %c0_10] : memref<16x1xf32, #tpu.memory_space<vmem>>, vector<16x1xf32>
    %11 = vector.broadcast %10 : vector<16x1xf32> to vector<16x256xf32>
    %12 = arith.addf %9, %11 : vector<16x256xf32>
    %c0_11 = arith.constant 0 : index
    %c0_12 = arith.constant 0 : index
    %13 = vector.load %arg5[%c0_11, %c0_12] : memref<16x256xf32, #tpu.memory_space<vmem>>, vector<16x256xf32>
    tpu.vector_store %arg5[%c0_11, %c0_12], %12 {strides = array<i32>} : memref<16x256xf32, #tpu.memory_space<vmem>>, vector<16x256xf32>,
    return
  }
}

</mosaic_0001>

<llo_original>
// kernel: tpu_custom_call.1
$region0: #{tpu_custom_call.1}
  #allocation0 [shape = 'u32[]', space=smem, size = 0x4, offset = 0x4, fixed_abs, tag = 'smem constant byte address 0x4 - core index']
  #allocation1 [shape = 'u32[144,128]{1,0:T(1,128)}', space=vmem, size = 0x12000, scoped, tag = 'internal scratch']
  %s0 = inlined_call_operand.vmem [shape: f32[8,256], index: 0, kind: input, shape index: {}]
  %s1 = inlined_call_operand.vmem [shape: f32[32,8], index: 1, kind: input, shape index: {}]
  %s2 = inlined_call_operand.vmem [shape: f32[32,1], index: 2, kind: input, shape index: {}]
  %s3 = inlined_call_operand.vmem [shape: f32[16,32], index: 3, kind: input, shape index: {}]
  %s4 = inlined_call_operand.vmem [shape: f32[16,1], index: 4, kind: input, shape index: {}]
  %s5 = inlined_call_operand.hbm [shape: f32[16,256], index: 5, kind: output, shape index: {}]
  %s6 = sld [smem:[#allocation0]]
  $region30: #{tpu_custom_call.1} parent=0
    _
  %s8 = ssub.s32 1, %s6
  %s9 = scalar_select 0, %s8, %s6
  $region1: #{tpu_custom_call.1} parent=0
    #allocation2 [shape = 'u8[16384]{0}', space=vmem, size = 0x4000, scoped, tag = 'output window, operand 0, single buffered']
    #allocation3 [shape = 's32[1]{0}', space=sflag, size = 0x4, scoped, tag = 'scoped memory for tpu_custom_call.1']
    %10 = vsyncpa [#allocation3], 0
    // Predicated region
    $region2: #{tpu_custom_call.1} parent=1 // pred_check
      _
    $region3: #{tpu_custom_call.1} parent=1 // pred_check_branch
      %12 = sbr.rel (0) target = $region5
    $region4: #{tpu_custom_call.1} parent=1 // pred_region
      _
    $region5: #{tpu_custom_call.1} parent=1 // pred_fallthru
      _
    // Predicated region
    $region6: #{tpu_custom_call.1} parent=1 // pred_check
      _
    $region7: #{tpu_custom_call.1} parent=1 // pred_check_branch
      %14 = sbr.rel (0) target = $region9
    $region8: #{tpu_custom_call.1} parent=1 // pred_region
      _
    $region9: #{tpu_custom_call.1} parent=1 // pred_fallthru
      _
    // Predicated region
    $region10: #{tpu_custom_call.1} parent=1 // pred_check
      _
    $region11: #{tpu_custom_call.1} parent=1 // pred_check_branch
      %16 = sbr.rel (0) target = $region13
    $region12: #{tpu_custom_call.1} parent=1 // pred_region
      _
    $region13: #{tpu_custom_call.1} parent=1 // pred_fallthru
      _
    // Predicated region
    $region14: #{tpu_custom_call.1} parent=1 // pred_check
      _
    $region15: #{tpu_custom_call.1} parent=1 // pred_check_branch
      %18 = sbr.rel (0) target = $region17
    $region16: #{tpu_custom_call.1} parent=1 // pred_region
      _
    $region17: #{tpu_custom_call.1} parent=1 // pred_fallthru
      _
    // Predicated region
    $region18: #{tpu_custom_call.1} parent=1 // pred_check
      _
    $region19: #{tpu_custom_call.1} parent=1 // pred_check_branch
      %20 = sbr.rel (0) target = $region21
    $region20: #{tpu_custom_call.1} parent=1 // pred_region
      _
    $region21: #{tpu_custom_call.1} parent=1 // pred_fallthru
      _
    %v21 = vld [vmem:[%s1] sm:$0xff]
    %v22 = vld [vmem:[%s1 + $0x8] sm:$0xff]
    %v23 = vld [vmem:[%s1 + $0x10] sm:$0xff]
    %v24 = vld [vmem:[%s1 + $0x18] sm:$0xff]
    %v25 = vld [vmem:[%s0] sm:$0xff]
    %v26 = vld [vmem:[%s0 + $0x8] sm:$0xff]
    %v27 = vld [vmem:[%s2] sm:$0xff]
    %v28 = vld [vmem:[%s2 + $0x8] sm:$0xff]
    %v29 = vld [vmem:[%s2 + $0x10] sm:$0xff]
    %v30 = vld [vmem:[%s2 + $0x18] sm:$0xff]
    %32 = vset.pattern.permute.xlu0 0
    %33 = vperm.xlu0 %32, %v27
    %v34 = vpop.permute.xlu0 %33
    %37 = vset.pattern.permute.xlu0 0
    %38 = vperm.xlu0 %37, %v28
    %v39 = vpop.permute.xlu0 %38
    %42 = vset.pattern.permute.xlu0 0
    %43 = vperm.xlu0 %42, %v29
    %v44 = vpop.permute.xlu0 %43
    %47 = vset.pattern.permute.xlu0 0
    %48 = vperm.xlu0 %47, %v30
    %v49 = vpop.permute.xlu0 %48
    %vm51 = vcmask 64512
    %v53 = vsel %vm51, %v21, 0
    %v56 = vsel %vm51, %v22, 0
    %v59 = vsel %vm51, %v23, 0
    %v62 = vsel %vm51, %v24, 0
    %64 = vmatprep.subr.mxu0 %v26
    %65 = vmatpush1.msra.mxu0 %v25
    %66 = vmatprep.subr.mxu0 0.0
    %67 = vmatpush1.msra.mxu0 0.0
    %68 = vmatprep.subr.mxu0 0.0
    %69 = vmatpush1.msra.mxu0 0.0
    %70 = vmatprep.subr.mxu0 0.0
    %71 = vmatpush1.msra.mxu0 0.0
    %72 = vmatprep.subr.mxu0 0.0
    %73 = vmatpush1.msra.mxu0 0.0
    %74 = vmatprep.subr.mxu0 0.0
    %75 = vmatpush1.msra.mxu0 0.0
    %76 = vmatprep.subr.mxu0 0.0
    %77 = vmatpush1.msra.mxu0 0.0
    %78 = vmatprep.subr.mxu0 0.0
    %79 = vmatpush1.msra.mxu0 0.0
    %80 = vmatprep.subr.mxu0 0.0
    %81 = vmatpush1.msra.mxu0 0.0
    %82 = vmatprep.subr.mxu0 0.0
    %83 = vmatpush1.msra.mxu0 0.0
    %84 = vmatprep.subr.mxu0 0.0
    %85 = vmatpush1.msra.mxu0 0.0
    %86 = vmatprep.subr.mxu0 0.0
    %87 = vmatpush1.msra.mxu0 0.0
    %88 = vmatprep.subr.mxu0 0.0
    %89 = vmatpush1.msra.mxu0 0.0
    %90 = vmatprep.subr.mxu0 0.0
    %91 = vmatpush1.msra.mxu0 0.0
    %92 = vmatprep.subr.mxu0 0.0
    %93 = vmatpush1.msra.mxu0 0.0
    %94 = vmatprep.subr.mxu0 0.0
    %95 = vmatpush1.msra.mxu0 0.0
    %96 = vmatprep.subr.mxu0 0.0
    %97 = vmatpush1.msra.mxu0 0.0
    %98 = vmatprep.subr.mxu0 0.0
    %99 = vmatpush1.msra.mxu0 0.0
    %100 = vmatprep.subr.mxu0 0.0
    %101 = vmatpush1.msra.mxu0 0.0
    %102 = vmatprep.subr.mxu0 0.0
    %103 = vmatpush1.msra.mxu0 0.0
    %104 = vmatprep.subr.mxu0 0.0
    %105 = vmatpush1.msra.mxu0 0.0
    %106 = vmatprep.subr.mxu0 0.0
    %107 = vmatpush1.msra.mxu0 0.0
    %108 = vmatprep.subr.mxu0 0.0
    %109 = vmatpush1.msra.mxu0 0.0
    %110 = vmatprep.subr.mxu0 0.0
    %111 = vmatpush1.msra.mxu0 0.0
    %112 = vmatprep.subr.mxu0 0.0
    %113 = vmatpush1.msra.mxu0 0.0
    %114 = vmatprep.subr.mxu0 0.0
    %115 = vmatpush1.msra.mxu0 0.0
    %116 = vmatprep.subr.mxu0 0.0
    %117 = vmatpush1.msra.mxu0 0.0
    %118 = vmatprep.subr.mxu0 0.0
    %119 = vmatpush1.msra.mxu0 0.0
    %120 = vmatprep.subr.mxu0 0.0
    %121 = vmatpush1.msra.mxu0 0.0
    %122 = vmatprep.subr.mxu0 0.0
    %123 = vmatpush1.msra.mxu0 0.0
    %124 = vmatprep.subr.mxu0 0.0
    %125 = vmatpush1.msra.mxu0 0.0
    %126 = vmatprep.subr.mxu0 0.0
    %127 = vmatpush1.msra.mxu0 0.0
    %128 = vmatprep.mubr.f32.mxu0 0.0
    %129 = vmatmul.mubr.f32.gmra.mrb[0].mxu0 %v53
    %v130 = vpop.f32.mrb[0].mxu0
    %v131 = vadd.f32 %v34, %v130
    %v132 = vpop.f32.mrb[0].mxu0
    %v133 = vadd.f32 %v34, %v132
    %134 = vmatprep.mubr.f32.mxu0 0.0
    %135 = vmatmul.mubr.f32.gmra.mrb[0].mxu0 %v56
    %v136 = vpop.f32.mrb[0].mxu0
    %v137 = vadd.f32 %v39, %v136
    %v138 = vpop.f32.mrb[0].mxu0
    %v139 = vadd.f32 %v39, %v138
    %140 = vmatprep.mubr.f32.mxu0 0.0
    %141 = vmatmul.mubr.f32.gmra.mrb[0].mxu0 %v59
    %v142 = vpop.f32.mrb[0].mxu0
    %v143 = vadd.f32 %v44, %v142
    %v144 = vpop.f32.mrb[0].mxu0
    %v145 = vadd.f32 %v44, %v144
    %146 = vmatprep.mubr.f32.mxu0 0.0
    %147 = vmatmul.mubr.f32.gmra.mrb[0].mxu0 %v62
    %v148 = vpop.f32.mrb[0].mxu0
    %v149 = vadd.f32 %v49, %v148
    %v150 = vpop.f32.mrb[0].mxu0
    %v151 = vadd.f32 %v49, %v150
    %152 = vdwg.mxu0
    %v153 = vmax.f32 %v131, 0.0
    %v154 = vmax.f32 %v133, 0.0
    %v155 = vmax.f32 %v137, 0.0
    %v156 = vmax.f32 %v139, 0.0
    %v157 = vmax.f32 %v143, 0.0
    %v158 = vmax.f32 %v145, 0.0
    %v159 = vmax.f32 %v149, 0.0
    %v160 = vmax.f32 %v151, 0.0
    %v161 = vld [vmem:[%s3] sm:$0xff]
    %v162 = vld [vmem:[%s3 + $0x8] sm:$0xff]
    %v163 = vld [vmem:[%s4] sm:$0xff]
    %v164 = vld [vmem:[%s4 + $0x8] sm:$0xff]
    %166 = vset.pattern.permute.xlu0 0
    %167 = vperm.xlu0 %166, %v163
    %v168 = vpop.permute.xlu0 %167
    %171 = vset.pattern.permute.xlu0 0
    %172 = vperm.xlu0 %171, %v164
    %v173 = vpop.permute.xlu0 %172
    %vm175 = vcmask 261120
    %v177 = vsel %vm175, %v161, 0
    %v180 = vsel %vm175, %v162, 0
    %182 = vmatprep.subr.mxu0 %v154
    %183 = vmatpush1.msra.mxu0 %v153
    %184 = vmatprep.subr.mxu0 %v156
    %185 = vmatpush1.msra.mxu0 %v155
    %186 = vmatprep.subr.mxu0 %v158
    %187 = vmatpush1.msra.mxu0 %v157
    %188 = vmatprep.subr.mxu0 %v160
    %189 = vmatpush1.msra.mxu0 %v159
    %190 = vmatprep.subr.mxu0 0.0
    %191 = vmatpush1.msra.mxu0 0.0
    %192 = vmatprep.subr.mxu0 0.0
    %193 = vmatpush1.msra.mxu0 0.0
    %194 = vmatprep.subr.mxu0 0.0
    %195 = vmatpush1.msra.mxu0 0.0
    %196 = vmatprep.subr.mxu0 0.0
    %197 = vmatpush1.msra.mxu0 0.0
    %198 = vmatprep.subr.mxu0 0.0
    %199 = vmatpush1.msra.mxu0 0.0
    %200 = vmatprep.subr.mxu0 0.0
    %201 = vmatpush1.msra.mxu0 0.0
    %202 = vmatprep.subr.mxu0 0.0
    %203 = vmatpush1.msra.mxu0 0.0
    %204 = vmatprep.subr.mxu0 0.0
    %205 = vmatpush1.msra.mxu0 0.0
    %206 = vmatprep.subr.mxu0 0.0
    %207 = vmatpush1.msra.mxu0 0.0
    %208 = vmatprep.subr.mxu0 0.0
    %209 = vmatpush1.msra.mxu0 0.0
    %210 = vmatprep.subr.mxu0 0.0
    %211 = vmatpush1.msra.mxu0 0.0
    %212 = vmatprep.subr.mxu0 0.0
    %213 = vmatpush1.msra.mxu0 0.0
    %214 = vmatprep.subr.mxu0 0.0
    %215 = vmatpush1.msra.mxu0 0.0
    %216 = vmatprep.subr.mxu0 0.0
    %217 = vmatpush1.msra.mxu0 0.0
    %218 = vmatprep.subr.mxu0 0.0
    %219 = vmatpush1.msra.mxu0 0.0
    %220 = vmatprep.subr.mxu0 0.0
    %221 = vmatpush1.msra.mxu0 0.0
    %222 = vmatprep.subr.mxu0 0.0
    %223 = vmatpush1.msra.mxu0 0.0
    %224 = vmatprep.subr.mxu0 0.0
    %225 = vmatpush1.msra.mxu0 0.0
    %226 = vmatprep.subr.mxu0 0.0
    %227 = vmatpush1.msra.mxu0 0.0
    %228 = vmatprep.subr.mxu0 0.0
    %229 = vmatpush1.msra.mxu0 0.0
    %230 = vmatprep.subr.mxu0 0.0
    %231 = vmatpush1.msra.mxu0 0.0
    %232 = vmatprep.subr.mxu0 0.0
    %233 = vmatpush1.msra.mxu0 0.0
    %234 = vmatprep.subr.mxu0 0.0
    %235 = vmatpush1.msra.mxu0 0.0
    %236 = vmatprep.subr.mxu0 0.0
    %237 = vmatpush1.msra.mxu0 0.0
    %238 = vmatprep.subr.mxu0 0.0
    %239 = vmatpush1.msra.mxu0 0.0
    %240 = vmatprep.subr.mxu0 0.0
    %241 = vmatpush1.msra.mxu0 0.0
    %242 = vmatprep.subr.mxu0 0.0
    %243 = vmatpush1.msra.mxu0 0.0
    %244 = vmatprep.subr.mxu0 0.0
    %245 = vmatpush1.msra.mxu0 0.0
    %246 = vmatprep.mubr.f32.mxu0 0.0
    %247 = vmatmul.mubr.f32.gmra.mrb[0].mxu0 %v177
    %v248 = vpop.f32.mrb[0].mxu0
    %v249 = vadd.f32 %v168, %v248
    %v250 = vpop.f32.mrb[0].mxu0
    %v251 = vadd.f32 %v168, %v250
    %252 = vmatprep.mubr.f32.mxu0 0.0
    %253 = vmatmul.mubr.f32.gmra.mrb[0].mxu0 %v180
    %v254 = vpop.f32.mrb[0].mxu0
    %v255 = vadd.f32 %v173, %v254
    %v256 = vpop.f32.mrb[0].mxu0
    %v257 = vadd.f32 %v173, %v256
    %258 = vdwg.mxu0
    %259 = vst [vmem:[#allocation2] sm:$0xff] %v249
    %260 = vst [vmem:[#allocation2 + $0x8] sm:$0xff] %v251
    %261 = vst [vmem:[#allocation2 + $0x10] sm:$0xff] %v255
    %262 = vst [vmem:[#allocation2 + $0x18] sm:$0xff] %v257
    // Predicated region
    $region22: #{tpu_custom_call.1} parent=1 // pred_check
      _
    $region23: #{tpu_custom_call.1} parent=1 // pred_check_branch
      %264 = sbr.rel (0) target = $region25
    $region24: #{tpu_custom_call.1} parent=1 // pred_region
      %s266 = ssub.s32 512, 512
      %267 = vsyncadd [#allocation3], %s266
      %s268 = sshll.u32 [#allocation2], 4
      %s269 = int_to_ptr.vmem [resolvable:$true] %s268
      %274 = dma.vmem_to_hbm [thread:$0]  %s269, 512, %s5, [#allocation3], 256, 256, 16
    $region25: #{tpu_custom_call.1} parent=1 // pred_fallthru
      _
    // Predicated region
    $region26: #{tpu_custom_call.1} parent=1 // pred_check
      _
    $region27: #{tpu_custom_call.1} parent=1 // pred_check_branch
      %276 = sbr.rel (0) target = $region29
    $region28: #{tpu_custom_call.1} parent=1 // pred_region
      %277 = dma.done [#allocation3], 512
    $region29: #{tpu_custom_call.1} parent=1 // pred_fallthru
      _
    %278 = vsyncpa [#allocation3], 1

</llo_original>
